<compile_context>
chip_gen: v5e
topology: v5e:2x2
jax: 0.10.0
libtpu: 0.0.40
codegen_flags: <defaults>
</compile_context>

<pallas_src>
from functools import partial

import jax
import jax.numpy as jnp
from jax.experimental import pallas as pl
from jax.experimental.pallas import tpu as pltpu


def _se_kernel(x_ref, w1_ref, w2_ref, o_ref, *, inv_hw):
    # x_ref / o_ref: (TB, C, HW_pad) block for TB batch elements.
    # Squeeze: sum over (padded) spatial, then multiply by the compile-time
    # constant 1/HW_true (padded lanes are zero, so the sum is exact).
    xsum = jnp.sum(x_ref[...].astype(jnp.float32), axis=-1)          # (TB, C)
    y = xsum * inv_hw                                                 # (TB, C)

    # Excitation: FC -> ReLU -> FC -> Sigmoid (all tiny, off the HBM path).
    h = jnp.dot(y, w1_ref[...], preferred_element_type=jnp.float32)   # (TB, C/r)
    h = jnp.maximum(h, 0.0)
    s = jnp.dot(h, w2_ref[...], preferred_element_type=jnp.float32)   # (TB, C)
    # sigmoid(s) = 1 / (1 + exp(-s)); exp on EUP, reciprocal exact so the
    # result matches the pure-JAX reference bit-for-bit (approx=True would
    # also be fine perf-wise, the epilogue is not on the critical path).
    s = pl.reciprocal(1.0 + jnp.exp(-s), approx=False)

    # Scale: re-read x from VMEM instead of holding the full upcast copy live
    # (avoids pinning C*HW/1024 vregs per batch element).
    o_ref[...] = (x_ref[...] * s[:, :, None].astype(x_ref.dtype)).astype(o_ref.dtype)


def _choose_tb(batch, c_pad, hw_pad, itemsize, vmem_budget_bytes):
    """Pick how many batch elements to process per grid step."""
    # in + out blocks, each double-buffered -> 4 live copies of the slab.
    per_batch = 4 * c_pad * hw_pad * itemsize
    tb = max(1, min(batch, vmem_budget_bytes // max(per_batch, 1)))
    # Keep at least 2 grid steps when possible so v7x's two TensorCores both
    # get work (no-op on v5e/v6e, which have a single TC).
    if batch >= 2:
        tb = min(tb, max(1, batch // 2))
    # Make TB divide B exactly so block shapes stay exact.
    while batch % tb:
        tb -= 1
    return tb


def se_layer(x, w1_t, w2_t, *, vmem_budget_bytes=24 * 1024 * 1024):
    """x: (B, C, H, W); w1_t: (C, C//r); w2_t: (C//r, C)."""
    B, C, H, W = x.shape
    Cr = w1_t.shape[1]
    HW = H * W

    # Lane-dense output: pad HW to a multiple of 128 (real SE spatial sizes
    # like 49/196/784 are not), and pad C to a multiple of 8 for sublanes.
    HW_pad = ((HW + 127) // 128) * 128
    C_pad = ((C + 7) // 8) * 8

    x_flat = x.reshape(B, C, HW)
    if HW_pad != HW or C_pad != C:
        x_flat = jnp.pad(x_flat, ((0, 0), (0, C_pad - C), (0, HW_pad - HW)))
    if C_pad != C:
        # Padded channels: zero rows into FC1, zero columns out of FC2 -> the
        # padded outputs are (0 * sigmoid(...)) and get sliced off anyway.
        w1_t = jnp.pad(w1_t, ((0, C_pad - C), (0, 0)))
        w2_t = jnp.pad(w2_t, ((0, 0), (0, C_pad - C)))

    TB = _choose_tb(B, C_pad, HW_pad, x.dtype.itemsize, vmem_budget_bytes)

    out_flat = pl.pallas_call(
        partial(_se_kernel, inv_hw=1.0 / float(HW)),
        out_shape=jax.ShapeDtypeStruct((B, C_pad, HW_pad), x.dtype),
        grid_spec=pltpu.PrefetchScalarGridSpec(
            num_scalar_prefetch=0,
            grid=(B // TB,),
            in_specs=[
                pl.BlockSpec((TB, C_pad, HW_pad), lambda b: (b, 0, 0)),
                pl.BlockSpec((C_pad, Cr), lambda b: (0, 0)),
                pl.BlockSpec((Cr, C_pad), lambda b: (0, 0)),
            ],
            out_specs=pl.BlockSpec((TB, C_pad, HW_pad), lambda b: (b, 0, 0)),
        ),
        # Overwrite the (padded) input slab in HBM instead of allocating a
        # second B*C*HW buffer.
        input_output_aliases={0: 0},
        compiler_params=pltpu.CompilerParams(
            dimension_semantics=("parallel",),
            # 32 MiB: above v5e's 16 MiB default scoped limit (unlocks bigger
            # tiles there), within v7x's 64 MiB physical VMEM.
            vmem_limit_bytes=32 * 1024 * 1024,
        ),
    )(x_flat, w1_t, w2_t)

    return out_flat[:, :C, :HW].reshape(B, C, H, W)


def se_layer_ref(x, w1_t, w2_t):
    """Pure-JAX reference mirroring the PyTorch forward."""
    y = jnp.mean(x, axis=(2, 3))                       # (B, C)
    h = jnp.maximum(y @ w1_t, 0.0)                     # (B, C//r)
    s = 1.0 / (1.0 + jnp.exp(-(h @ w2_t)))             # (B, C)
    return x * s[:, :, None, None]


if __name__ == "__main__":
    # SELayer(channel=64, reduction=16) -> hidden = 4.
    # H = W = 14 (HW = 196) exercises the lane-padding path (padded to 256).
    B, C, H, W = 2, 64, 14, 14
    reduction = 16
    Cr = C // reduction

    key = jax.random.PRNGKey(0)
    kx, k1, k2 = jax.random.split(key, 3)

    x = jax.random.normal(kx, (B, C, H, W), dtype=jnp.float32)
    # nn.Linear(C, C//r, bias=False): weight shape (C//r, C); store transposed.
    w1 = jax.random.uniform(k1, (Cr, C), dtype=jnp.float32,
                            minval=-1.0 / jnp.sqrt(C), maxval=1.0 / jnp.sqrt(C))
    # nn.Linear(C//r, C, bias=False): weight shape (C, C//r); store transposed.
    w2 = jax.random.uniform(k2, (C, Cr), dtype=jnp.float32,
                            minval=-1.0 / jnp.sqrt(Cr), maxval=1.0 / jnp.sqrt(Cr))
    w1_t = w1.T  # (C, Cr)
    w2_t = w2.T  # (Cr, C)

    se_jit = jax.jit(se_layer)
    out = se_jit(x, w1_t, w2_t)
    jax.block_until_ready(out)

    ref = se_layer_ref(x, w1_t, w2_t)
    assert out.shape == (B, C, H, W)
    assert jnp.allclose(out, ref, atol=1e-5, rtol=1e-5), "mismatch vs reference"

    print("KERNEL_OK")
</pallas_src>

<mosaic_0001>
module attributes {stable_mosaic.version = 11 : i64} {
  func.func @_se_kernel(%arg0: i32, %arg1: memref<1x64x256xf32, #tpu.memory_space<vmem>>, %arg2: memref<64x4xf32, #tpu.memory_space<vmem>>, %arg3: memref<4x64xf32, #tpu.memory_space<vmem>>, %arg4: memref<1x64x256xf32, #tpu.memory_space<vmem>>) attributes {dimension_semantics = [#tpu.dimension_semantics<parallel>], iteration_bounds = array<i64: 2>, scalar_prefetch = 0 : i64, scratch_operands = 0 : i64, tpu.core_type = #tpu.core_type<tc>, window_params = [{transform_indices = @transform_0, window_bounds = array<i64: 1, 64, 256>}, {pipeline_mode = #tpu.pipeline_mode<synchronous>, transform_indices = @transform_1, window_bounds = array<i64: 64, 4>}, {pipeline_mode = #tpu.pipeline_mode<synchronous>, transform_indices = @transform_2, window_bounds = array<i64: 4, 64>}, {transform_indices = @transform_3, window_bounds = array<i64: 1, 64, 256>}]} {
    %c0 = arith.constant 0 : index
    %c0_0 = arith.constant 0 : index
    %c0_1 = arith.constant 0 : index
    %0 = vector.load %arg1[%c0, %c0_0, %c0_1] : memref<1x64x256xf32, #tpu.memory_space<vmem>>, vector<1x64x256xf32>
    %cst = arith.constant dense<0.000000e+00> : vector<1x64xf32>
    %1 = vector.multi_reduction <add>, %0, %cst [2] : vector<1x64x256xf32> to vector<1x64xf32>
    %cst_2 = arith.constant 0.00510204071 : f32
    %2 = vector.broadcast %cst_2 : f32 to vector<1x64xf32>
    %3 = arith.mulf %1, %2 : vector<1x64xf32>
    %c0_3 = arith.constant 0 : index
    %c0_4 = arith.constant 0 : index
    %4 = vector.load %arg2[%c0_3, %c0_4] : memref<64x4xf32, #tpu.memory_space<vmem>>, vector<64x4xf32>
    %cst_5 = arith.constant dense<0.000000e+00> : vector<1x4xf32>
    %5 = tpu.matmul %3, %4, %cst_5 {dimension_numbers = #tpu.dot_dimension_numbers<[1], [0], [0], [1], [0, 0, 1, 1], [], []>} : vector<1x64xf32>, vector<64x4xf32>, vector<1x4xf32> -> vector<1x4xf32>
    %cst_6 = arith.constant 0.000000e+00 : f32
    %6 = vector.broadcast %cst_6 : f32 to vector<1x4xf32>
    %7 = arith.maximumf %5, %6 : vector<1x4xf32>
    %c0_7 = arith.constant 0 : index
    %c0_8 = arith.constant 0 : index
    %8 = vector.load %arg3[%c0_7, %c0_8] : memref<4x64xf32, #tpu.memory_space<vmem>>, vector<4x64xf32>
    %cst_9 = arith.constant dense<0.000000e+00> : vector<1x64xf32>
    %9 = tpu.matmul %7, %8, %cst_9 {dimension_numbers = #tpu.dot_dimension_numbers<[1], [0], [0], [1], [0, 0, 1, 1], [], []>} : vector<1x4xf32>, vector<4x64xf32>, vector<1x64xf32> -> vector<1x64xf32>
    %cst_10 = arith.constant 0.000000e+00 : f32
    %10 = vector.broadcast %cst_10 : f32 to vector<1x64xf32>
    %11 = arith.subf %10, %9 : vector<1x64xf32>
    %12 = math.exp %11 : vector<1x64xf32>
    %cst_11 = arith.constant 1.000000e+00 : f32
    %13 = vector.broadcast %cst_11 : f32 to vector<1x64xf32>
    %14 = arith.addf %13, %12 : vector<1x64xf32>
    %15 = tpu.reciprocal %14 : vector<1x64xf32> -> vector<1x64xf32>
    %c0_12 = arith.constant 0 : index
    %c0_13 = arith.constant 0 : index
    %c0_14 = arith.constant 0 : index
    %16 = vector.load %arg1[%c0_12, %c0_13, %c0_14] : memref<1x64x256xf32, #tpu.memory_space<vmem>>, vector<1x64x256xf32>
    %17 = vector.shape_cast %15 : vector<1x64xf32> to vector<1x64x1xf32>
    %18 = vector.broadcast %17 : vector<1x64x1xf32> to vector<1x64x256xf32>
    %19 = arith.mulf %16, %18 : vector<1x64x256xf32>
    %c0_15 = arith.constant 0 : index
    %c0_16 = arith.constant 0 : index
    %c0_17 = arith.constant 0 : index
    %20 = vector.load %arg4[%c0_15, %c0_16, %c0_17] : memref<1x64x256xf32, #tpu.memory_space<vmem>>, vector<1x64x256xf32>
    tpu.vector_store %arg4[%c0_15, %c0_16, %c0_17], %19 {strides = array<i32>} : memref<1x64x256xf32, #tpu.memory_space<vmem>>, vector<1x64x256xf32>,
    return
  }
  func.func @transform_0(%arg0: i32) -> (i32, i32, i32) {
    %c0_i32 = arith.constant 0 : i32
    %c0_i32_0 = arith.constant 0 : i32
    %c0_i32_1 = arith.constant 0 : i32
    return %arg0, %c0_i32, %c0_i32_0 : i32, i32, i32
  }
  func.func @transform_1(%arg0: i32) -> (i32, i32) {
    %c0_i32 = arith.constant 0 : i32
    %c0_i32_0 = arith.constant 0 : i32
    %c0_i32_1 = arith.constant 0 : i32
    return %c0_i32, %c0_i32_0 : i32, i32
  }
  func.func @transform_2(%arg0: i32) -> (i32, i32) {
    %c0_i32 = arith.constant 0 : i32
    %c0_i32_0 = arith.constant 0 : i32
    %c0_i32_1 = arith.constant 0 : i32
    return %c0_i32, %c0_i32_0 : i32, i32
  }
  func.func @transform_3(%arg0: i32) -> (i32, i32, i32) {
    %c0_i32 = arith.constant 0 : i32
    %c0_i32_0 = arith.constant 0 : i32
    %c0_i32_1 = arith.constant 0 : i32
    return %arg0, %c0_i32, %c0_i32_0 : i32, i32, i32
  }
}

</mosaic_0001>

<llo_original>
// kernel: se_layer.1
$region0: #{se_layer.1}
  #allocation0 [shape = 'u32[]', space=smem, size = 0x4, offset = 0x4, fixed_abs, tag = 'smem constant byte address 0x4 - core index']
  #allocation1 [shape = 'u32[72,128]{1,0:T(1,128)}', space=vmem, size = 0x9000, scoped, tag = 'internal scratch']
  %s0 = inlined_call_operand.vmem [shape: f32[2,64,256], index: 0, kind: input, shape index: {}, may-alias: {0,3}]
  %s1 = inlined_call_operand.vmem [shape: f32[64,4], index: 1, kind: input, shape index: {}]
  %s2 = inlined_call_operand.vmem [shape: f32[4,64], index: 2, kind: input, shape index: {}]
  %s3 = inlined_call_operand.vmem [shape: f32[2,64,256], index: 3, kind: output, shape index: {}, may-alias: {0,3}]
  %s4 = sld [smem:[#allocation0]]
  $region45: #{se_layer.1} parent=0
    _
  %s6 = ssub.s32 1, %s4
  %s7 = scalar_select 0, %s6, %s4
  loop: start=0, step=1, limit=4
  $region2: #{se_layer.1} parent=0 // loop_pre_header
    _
  $region3: #{se_layer.1} parent=0 // loop_header
    %s9 = sphi 0, %s13
    %p10 = scmp.ge.s32.totalorder %s9, 4
    %s19 = sphi 0, %s21
    %s22 = sphi 0, %s19
    %s23 = sphi 0, %s22
    %s39 = sphi 0, %s23
    %s43 = sphi 0, %s43
    %s45 = sphi 0, %s43
    %s46 = sphi 0, %s45
    %s60 = sphi 0, %s46
    %s64 = sphi 0, %s64
    %s66 = sphi 0, %s64
    %s67 = sphi 0, %s66
    %s81 = sphi 0, %s67
    %s87 = sphi 0, %s89
    %s90 = sphi 0, %s87
    %s91 = sphi 0, %s90
    %s107 = sphi 0, %s91
  $region4: #{se_layer.1} parent=0 // loop_header_branch
    %12 = sbr.rel (%p10) target = $region8
  $region5: #{se_layer.1} parent=0 // loop_body
    %s14 = ssub.s32 %s9, 1
    %s15 = ssub.s32 %s9, 2
    %s16 = sadd.s32 %s9, 1
    %s17 = ssub.s32 %s9, %s16
    %p18 = scmp.eq.s32.totalorder %s17, 0
    %s20 = sadd.s32 %s19, 1
    %s21 = scalar_select %p18, %s19, %s20
    %p24 = pneg %p18
    %p25 = scmp.eq.s32.totalorder %s9, 1
    %p26 = por %p24, %p25
    %p27 = scmp.ne.s32.totalorder %s19, %s22
    %p28 = scmp.eq.s32.totalorder %s9, 0
    %p29 = por %p27, %p28
    %p30 = scmp.ne.s32.totalorder %s19, %s22
    %p31 = scmp.eq.s32.totalorder %s14, 1
    %p32 = por %p30, %p31
    %p33 = scmp.ne.s32.totalorder %s22, %s23
    %p34 = scmp.eq.s32.totalorder %s14, 0
    %p35 = por %p33, %p34
    %p36 = scmp.ne.s32.totalorder %s22, %s23
    %p37 = scmp.eq.s32.totalorder %s15, 1
    %p38 = por %p36, %p37
    %p40 = scmp.ne.s32.totalorder %s23, %s39
    %p41 = scmp.eq.s32.totalorder %s15, 0
    %p42 = por %p40, %p41
    %s44 = sadd.s32 %s43, 1
    %p47 = scmp.eq.s32.totalorder %s9, 1
    %p48 = scmp.ne.s32.totalorder %s43, %s45
    %p49 = scmp.eq.s32.totalorder %s9, 0
    %p50 = por %p48, %p49
    %p51 = scmp.ne.s32.totalorder %s43, %s45
    %p52 = scmp.eq.s32.totalorder %s14, 1
    %p53 = por %p51, %p52
    %p54 = scmp.ne.s32.totalorder %s45, %s46
    %p55 = scmp.eq.s32.totalorder %s14, 0
    %p56 = por %p54, %p55
    %p57 = scmp.ne.s32.totalorder %s45, %s46
    %p58 = scmp.eq.s32.totalorder %s15, 1
    %p59 = por %p57, %p58
    %p61 = scmp.ne.s32.totalorder %s46, %s60
    %p62 = scmp.eq.s32.totalorder %s15, 0
    %p63 = por %p61, %p62
    %s65 = sadd.s32 %s64, 1
    %p68 = scmp.eq.s32.totalorder %s9, 1
    %p69 = scmp.ne.s32.totalorder %s64, %s66
    %p70 = scmp.eq.s32.totalorder %s9, 0
    %p71 = por %p69, %p70
    %p72 = scmp.ne.s32.totalorder %s64, %s66
    %p73 = scmp.eq.s32.totalorder %s14, 1
    %p74 = por %p72, %p73
    %p75 = scmp.ne.s32.totalorder %s66, %s67
    %p76 = scmp.eq.s32.totalorder %s14, 0
    %p77 = por %p75, %p76
    %p78 = scmp.ne.s32.totalorder %s66, %s67
    %p79 = scmp.eq.s32.totalorder %s15, 1
    %p80 = por %p78, %p79
    %p82 = scmp.ne.s32.totalorder %s67, %s81
    %p83 = scmp.eq.s32.totalorder %s15, 0
    %p84 = por %p82, %p83
    %s85 = ssub.s32 %s9, %s16
    %p86 = scmp.eq.s32.totalorder %s85, 0
    %s88 = sadd.s32 %s87, 1
    %s89 = scalar_select %p86, %s87, %s88
    %p92 = pneg %p86
    %p93 = scmp.eq.s32.totalorder %s9, 1
    %p94 = por %p92, %p93
    %p95 = scmp.ne.s32.totalorder %s87, %s90
    %p96 = scmp.eq.s32.totalorder %s9, 0
    %p97 = por %p95, %p96
    %p98 = scmp.ne.s32.totalorder %s87, %s90
    %p99 = scmp.eq.s32.totalorder %s14, 1
    %p100 = por %p98, %p99
    %p101 = scmp.ne.s32.totalorder %s90, %s91
    %p102 = scmp.eq.s32.totalorder %s14, 0
    %p103 = por %p101, %p102
    %p104 = scmp.ne.s32.totalorder %s90, %s91
    %p105 = scmp.eq.s32.totalorder %s15, 1
    %p106 = por %p104, %p105
    %p108 = scmp.ne.s32.totalorder %s91, %s107
    %p109 = scmp.eq.s32.totalorder %s15, 0
    %p110 = por %p108, %p109
    %p111 = scmp.le.s32.totalorder 1, %s9
    %p112 = scmp.lt.s32.totalorder %s9, 3
    %p113 = pnand %p111, %p112
    %p114 = pneg %p113
    // Predicated region
    $region9: #{se_layer.1} parent=5 // pred_check
      _
    $region10: #{se_layer.1} parent=5 // pred_check_branch
      %116 = sbr.rel (%p113) target = $region12
    $region11: #{se_layer.1} parent=5 // pred_region
      %s117 = ssub.s32 %s9, 1
      // Predicated region
      $region13: #{se_layer.1} parent=11 // pred_check
        %p118 = pneg %p56
      $region14: #{se_layer.1} parent=11 // pred_check_branch
        %120 = sbr.rel (%p118) target = $region16
      $region15: #{se_layer.1} parent=11 // pred_region
        _
      $region16: #{se_layer.1} parent=11 // pred_fallthru
        _
      // Predicated region
      $region17: #{se_layer.1} parent=11 // pred_check
        %p121 = pneg %p77
      $region18: #{se_layer.1} parent=11 // pred_check_branch
        %123 = sbr.rel (%p121) target = $region20
      $region19: #{se_layer.1} parent=11 // pred_region
        _
      $region20: #{se_layer.1} parent=11 // pred_fallthru
        _
    $region12: #{se_layer.1} parent=5 // pred_fallthru
      _
    %p124 = scmp.lt.s32.totalorder %s9, 2
    // Predicated region
    $region21: #{se_layer.1} parent=5 // pred_check
      %p125 = pneg %p124
    $region22: #{se_layer.1} parent=5 // pred_check_branch
      %127 = sbr.rel (%p125) target = $region24
    $region23: #{se_layer.1} parent=5 // pred_region
      // Predicated region
      $region25: #{se_layer.1} parent=23 // pred_check
        %p128 = pneg %p29
      $region26: #{se_layer.1} parent=23 // pred_check_branch
        %130 = sbr.rel (%p128) target = $region28
      $region27: #{se_layer.1} parent=23 // pred_region
        %p131 = scmp.lt.s32.totalorder %s9, 1
        %s132 = scalar_select %p131, %s9, 1
        %s133 = smul.addr %s132, 16
        %s134 = smul.addr %s133, 8
        %s135 = scalar_lea.vmem %s0, %s134
      $region28: #{se_layer.1} parent=23 // pred_fallthru
        _
    $region24: #{se_layer.1} parent=5 // pred_fallthru
      _
    %p136 = scmp.le.s32.totalorder 1, %s9
    %p137 = scmp.lt.s32.totalorder %s9, 3
    %p138 = pnand %p136, %p137
    %p139 = pneg %p138
    // Predicated region
    $region29: #{se_layer.1} parent=5 // pred_check
      _
    $region30: #{se_layer.1} parent=5 // pred_check_branch
      %141 = sbr.rel (%p138) target = $region32
    $region31: #{se_layer.1} parent=5 // pred_region
      %s142 = ssub.s32 %s9, 1
      %p143 = scmp.lt.s32.totalorder %s14, 1
      %s144 = scalar_select %p143, %s14, 1
      %s145 = smul.addr %s144, 16
      %s146 = smul.addr %s145, 8
      %s147 = scalar_lea.vmem %s0, %s146
      %p148 = pneg %p35
      %p149 = pneg %p32
      %p150 = pneg %p56
      %p151 = pneg %p53
      %p152 = pneg %p77
      %p153 = pneg %p74
      %p154 = pneg %p103
      %p155 = pneg %p100
      %p156 = scmp.lt.s32.totalorder %s14, 1
      %s157 = scalar_select %p156, %s14, 1
      %s158 = smul.addr %s157, 16
      %s159 = smul.addr %s158, 8
      %s160 = scalar_lea.vmem %s3, %s159
      %p161 = scmp.lt.s32.totalorder %s14, 1
      %s162 = scalar_select %p161, %s14, 1
      %s163 = smul.addr %s162, 16
      %s164 = smul.addr %s163, 8
      %s165 = scalar_lea.vmem %s0, %s164
      %p166 = scmp.lt.s32.totalorder %s14, 1
      %s167 = scalar_select %p166, %s14, 1
      %s168 = smul.addr %s167, 16
      %s169 = smul.addr %s168, 8
      %s170 = scalar_lea.vmem %s3, %s169
      %v171 = vld [vmem:[%s165] sm:$0xff]
      %v172 = vld [vmem:[%s165 + $0x8] sm:$0xff]
      %v173 = vld [vmem:[%s165 + $0x10] sm:$0xff]
      %v174 = vld [vmem:[%s165 + $0x18] sm:$0xff]
      %v175 = vld [vmem:[%s165 + $0x20] sm:$0xff]
      %v176 = vld [vmem:[%s165 + $0x28] sm:$0xff]
      %v177 = vld [vmem:[%s165 + $0x30] sm:$0xff]
      %v178 = vld [vmem:[%s165 + $0x38] sm:$0xff]
      %v179 = vld [vmem:[%s165 + $0x40] sm:$0xff]
      %v180 = vld [vmem:[%s165 + $0x48] sm:$0xff]
      %v181 = vld [vmem:[%s165 + $0x50] sm:$0xff]
      %v182 = vld [vmem:[%s165 + $0x58] sm:$0xff]
      %v183 = vld [vmem:[%s165 + $0x60] sm:$0xff]
      %v184 = vld [vmem:[%s165 + $0x68] sm:$0xff]
      %v185 = vld [vmem:[%s165 + $0x70] sm:$0xff]
      %v186 = vld [vmem:[%s165 + $0x78] sm:$0xff]
      %v187 = vadd.f32 %v171, %v172
      %188 = vadd.xlane.f32.xlu0 %v187
      %v189 = vpop.xlane.xlu0 %188
      %v190 = vadd.f32 %v173, %v174
      %191 = vadd.xlane.f32.xlu0 %v190
      %v192 = vpop.xlane.xlu0 %191
      %v193 = vadd.f32 %v175, %v176
      %194 = vadd.xlane.f32.xlu0 %v193
      %v195 = vpop.xlane.xlu0 %194
      %v196 = vadd.f32 %v177, %v178
      %197 = vadd.xlane.f32.xlu0 %v196
      %v198 = vpop.xlane.xlu0 %197
      %v199 = vadd.f32 %v179, %v180
      %200 = vadd.xlane.f32.xlu0 %v199
      %v201 = vpop.xlane.xlu0 %200
      %v202 = vadd.f32 %v181, %v182
      %203 = vadd.xlane.f32.xlu0 %v202
      %v204 = vpop.xlane.xlu0 %203
      %v205 = vadd.f32 %v183, %v184
      %206 = vadd.xlane.f32.xlu0 %v205
      %v207 = vpop.xlane.xlu0 %206
      %v208 = vadd.f32 %v185, %v186
      %209 = vadd.xlane.f32.xlu0 %v208
      %v210 = vpop.xlane.xlu0 %209
      %v211 = vmul.f32 %v189, 0.0051020407
      %v212 = vmul.f32 %v192, 0.0051020407
      %v213 = vmul.f32 %v195, 0.0051020407
      %v214 = vmul.f32 %v198, 0.0051020407
      %v215 = vmul.f32 %v201, 0.0051020407
      %v216 = vmul.f32 %v204, 0.0051020407
      %v217 = vmul.f32 %v207, 0.0051020407
      %v218 = vmul.f32 %v210, 0.0051020407
      %v219 = vld [vmem:[%s1] sm:$0xff]
      %v220 = vld [vmem:[%s1 + $0x8] sm:$0xff]
      %v221 = vld [vmem:[%s1 + $0x10] sm:$0xff]
      %v222 = vld [vmem:[%s1 + $0x18] sm:$0xff]
      %v223 = vld [vmem:[%s1 + $0x20] sm:$0xff]
      %v224 = vld [vmem:[%s1 + $0x28] sm:$0xff]
      %v225 = vld [vmem:[%s1 + $0x30] sm:$0xff]
      %v226 = vld [vmem:[%s1 + $0x38] sm:$0xff]
      %v235 = vlaneseq
      %v236 = vand.u32 %v235, 127
      %v237 = vperm.slane %v211, %v236
      %v238 = vadd.s32 %v236, 4294967288
      %v239 = vperm.slane %v212, %v238
      %vm240 = vcmask 130112
      %v241 = vsel %vm240, %v239, %v237
      %v242 = vadd.s32 %v236, 4294967280
      %v243 = vperm.slane %v213, %v242
      %vm244 = vcmask 195712
      %v245 = vsel %vm244, %v243, %v241
      %v246 = vadd.s32 %v236, 4294967272
      %v247 = vperm.slane %v214, %v246
      %vm248 = vcmask 261312
      %v249 = vsel %vm248, %v247, %v245
      %v250 = vadd.s32 %v236, 4294967264
      %v251 = vperm.slane %v215, %v250
      %vm252 = vcmask 326912
      %v253 = vsel %vm252, %v251, %v249
      %v254 = vadd.s32 %v236, 4294967256
      %v255 = vperm.slane %v216, %v254
      %vm256 = vcmask 392512
      %v257 = vsel %vm256, %v255, %v253
      %v258 = vadd.s32 %v236, 4294967248
      %v259 = vperm.slane %v217, %v258
      %vm260 = vcmask 458112
      %v261 = vsel %vm260, %v259, %v257
      %v262 = vadd.s32 %v236, 4294967240
      %v263 = vperm.slane %v218, %v262
      %vm264 = vcmask 523712
      %v265 = vsel %vm264, %v263, %v261
      %vm266 = vcmask 523264
      %v267 = vsel %vm266, %v265, 0
      %269 = vmatpush.msra.mxu0 0.0
      %270 = vmatpush.msra.mxu0 0.0
      %271 = vmatpush.msra.mxu0 0.0
      %272 = vmatpush.msra.mxu0 0.0
      %273 = vmatpush.msra.mxu0 0.0
      %274 = vmatpush.msra.mxu0 0.0
      %275 = vmatpush.msra.mxu0 0.0
      %276 = vmatpush.msra.mxu0 0.0
      %277 = vmatpush.msra.mxu0 %v226
      %278 = vmatpush.msra.mxu0 %v225
      %279 = vmatpush.msra.mxu0 %v224
      %280 = vmatpush.msra.mxu0 %v223
      %281 = vmatpush.msra.mxu0 %v222
      %282 = vmatpush.msra.mxu0 %v221
      %283 = vmatpush.msra.mxu0 %v220
      %284 = vmatpush.msra.mxu0 %v219
      %285 = vmatmul.f32.gmra.mxu0 %v267
      %v286 = vpop.f32.mrf.mxu0
      %v287 = vadd.f32 0.0, %v286
      %288 = vdwg.mxu0
      %v289 = vmax.f32 %v287, 0.0
      %v290 = vld [vmem:[%s2] sm:$0xf]
      %vm291 = vcmask 31744
      %v293 = vsel %vm291, %v289, 0
      %vm295 = vcmask 1043456
      %v297 = vsel %vm295, %v290, 0
      %299 = vmatpush.msra.mxu0 0.0
      %300 = vmatpush.msra.mxu0 0.0
      %301 = vmatpush.msra.mxu0 0.0
      %302 = vmatpush.msra.mxu0 0.0
      %303 = vmatpush.msra.mxu0 0.0
      %304 = vmatpush.msra.mxu0 0.0
      %305 = vmatpush.msra.mxu0 0.0
      %306 = vmatpush.msra.mxu0 0.0
      %307 = vmatpush.msra.mxu0 0.0
      %308 = vmatpush.msra.mxu0 0.0
      %309 = vmatpush.msra.mxu0 0.0
      %310 = vmatpush.msra.mxu0 0.0
      %311 = vmatpush.msra.mxu0 0.0
      %312 = vmatpush.msra.mxu0 0.0
      %313 = vmatpush.msra.mxu0 0.0
      %314 = vmatpush.msra.mxu0 %v297
      %315 = vmatmul.f32.gmra.mxu0 %v293
      %v316 = vpop.f32.mrf.mxu0
      %v317 = vadd.f32 0.0, %v316
      %318 = vdwg.mxu0
      %v319 = vsub.f32 0.0, %v317
      %v320 = vmul.f32 %v319, 1.442695
      %v321 = vpow.pop %v320
      %v322 = vadd.f32 %v321, 1.0
      %v323 = vrcp.pop %v322
      %v324 = vmul.f32 %v322, %v323
      %v325 = vsub.f32 1.0, %v324
      %v326 = vmul.f32 %v323, %v325
      %v327 = vadd.f32 %v323, %v326
      %vm328 = vweird.f32 %v322
      %vm329 = vweird.f32 %v323
      %vm330 = vmor %vm328, %vm329
      %v331 = vsel %vm330, %v323, %v327
      %v332 = vand.u32 2147483647, %v322
      %vm333 = vcmp.eq.f32.partialorder %v332, 8.507059e+37
      %v334 = vand.u32 %v322, 2147483648
      %v335 = vor.u32 1.1754944e-38, %v334
      %v336 = vsel %vm333, %v335, %v331
      %v337 = vperm.slane %v336, 0
      %v338 = vlaneseq
      %v339 = vshrl.u32 %v338, 7
      %341 = vset.pattern.permute.xlu0 %v339
      %342 = vperm.xlu0 %341, %v337
      %v343 = vpop.permute.xlu0 %342
      %v344 = vlaneseq
      %v345 = vshrl.u32 %v344, 7
      %v346 = vadd.s32 %v345, 8
      %347 = vset.pattern.permute.xlu0 %v346
      %348 = vperm.xlu0 %347, %v337
      %v349 = vpop.permute.xlu0 %348
      %v350 = vlaneseq
      %v351 = vshrl.u32 %v350, 7
      %v352 = vadd.s32 %v351, 16
      %353 = vset.pattern.permute.xlu0 %v352
      %354 = vperm.xlu0 %353, %v337
      %v355 = vpop.permute.xlu0 %354
      %v356 = vlaneseq
      %v357 = vshrl.u32 %v356, 7
      %v358 = vadd.s32 %v357, 24
      %359 = vset.pattern.permute.xlu0 %v358
      %360 = vperm.xlu0 %359, %v337
      %v361 = vpop.permute.xlu0 %360
      %v362 = vlaneseq
      %v363 = vshrl.u32 %v362, 7
      %v364 = vadd.s32 %v363, 32
      %365 = vset.pattern.permute.xlu0 %v364
      %366 = vperm.xlu0 %365, %v337
      %v367 = vpop.permute.xlu0 %366
      %v368 = vlaneseq
      %v369 = vshrl.u32 %v368, 7
      %v370 = vadd.s32 %v369, 40
      %371 = vset.pattern.permute.xlu0 %v370
      %372 = vperm.xlu0 %371, %v337
      %v373 = vpop.permute.xlu0 %372
      %v374 = vlaneseq
      %v375 = vshrl.u32 %v374, 7
      %v376 = vadd.s32 %v375, 48
      %377 = vset.pattern.permute.xlu0 %v376
      %378 = vperm.xlu0 %377, %v337
      %v379 = vpop.permute.xlu0 %378
      %v380 = vlaneseq
      %v381 = vshrl.u32 %v380, 7
      %v382 = vadd.s32 %v381, 56
      %383 = vset.pattern.permute.xlu0 %v382
      %384 = vperm.xlu0 %383, %v337
      %v385 = vpop.permute.xlu0 %384
      %v386 = vmul.f32 %v171, %v343
      %v387 = vmul.f32 %v172, %v343
      %v388 = vmul.f32 %v173, %v349
      %v389 = vmul.f32 %v174, %v349
      %v390 = vmul.f32 %v175, %v355
      %v391 = vmul.f32 %v176, %v355
      %v392 = vmul.f32 %v177, %v361
      %v393 = vmul.f32 %v178, %v361
      %v394 = vmul.f32 %v179, %v367
      %v395 = vmul.f32 %v180, %v367
      %v396 = vmul.f32 %v181, %v373
      %v397 = vmul.f32 %v182, %v373
      %v398 = vmul.f32 %v183, %v379
      %v399 = vmul.f32 %v184, %v379
      %v400 = vmul.f32 %v185, %v385
      %v401 = vmul.f32 %v186, %v385
      %402 = vst [vmem:[%s170] sm:$0xff] %v386
      %403 = vst [vmem:[%s170 + $0x8] sm:$0xff] %v387
      %404 = vst [vmem:[%s170 + $0x10] sm:$0xff] %v388
      %405 = vst [vmem:[%s170 + $0x18] sm:$0xff] %v389
      %406 = vst [vmem:[%s170 + $0x20] sm:$0xff] %v390
      %407 = vst [vmem:[%s170 + $0x28] sm:$0xff] %v391
      %408 = vst [vmem:[%s170 + $0x30] sm:$0xff] %v392
      %409 = vst [vmem:[%s170 + $0x38] sm:$0xff] %v393
      %410 = vst [vmem:[%s170 + $0x40] sm:$0xff] %v394
      %411 = vst [vmem:[%s170 + $0x48] sm:$0xff] %v395
      %412 = vst [vmem:[%s170 + $0x50] sm:$0xff] %v396
      %413 = vst [vmem:[%s170 + $0x58] sm:$0xff] %v397
      %414 = vst [vmem:[%s170 + $0x60] sm:$0xff] %v398
      %415 = vst [vmem:[%s170 + $0x68] sm:$0xff] %v399
      %416 = vst [vmem:[%s170 + $0x70] sm:$0xff] %v400
      %417 = vst [vmem:[%s170 + $0x78] sm:$0xff] %v401
      %p418 = scmp.lt.s32.totalorder %s14, 1
      %s419 = scalar_select %p418, %s14, 1
      %s420 = smul.addr %s419, 16
      %s421 = smul.addr %s420, 8
      %s422 = scalar_lea.vmem %s3, %s421
      // Predicated region
      $region33: #{se_layer.1} parent=31 // pred_check
        %p423 = pneg %p100
      $region34: #{se_layer.1} parent=31 // pred_check_branch
        %425 = sbr.rel (%p423) target = $region36
      $region35: #{se_layer.1} parent=31 // pred_region
        _
      $region36: #{se_layer.1} parent=31 // pred_fallthru
        _
    $region32: #{se_layer.1} parent=5 // pred_fallthru
      _
    %p426 = scmp.le.s32.totalorder 2, %s9
    // Predicated region
    $region37: #{se_layer.1} parent=5 // pred_check
      %p427 = pneg %p426
    $region38: #{se_layer.1} parent=5 // pred_check_branch
      %429 = sbr.rel (%p427) target = $region40
    $region39: #{se_layer.1} parent=5 // pred_region
      %s430 = ssub.s32 %s9, 2
      // Predicated region
      $region41: #{se_layer.1} parent=39 // pred_check
        %p431 = pneg %p106
      $region42: #{se_layer.1} parent=39 // pred_check_branch
        %433 = sbr.rel (%p431) target = $region44
      $region43: #{se_layer.1} parent=39 // pred_region
        %p434 = scmp.lt.s32.totalorder %s15, 1
        %s435 = scalar_select %p434, %s15, 1
        %s436 = smul.addr %s435, 16
        %s437 = smul.addr %s436, 8
        %s438 = scalar_lea.vmem %s3, %s437
      $region44: #{se_layer.1} parent=39 // pred_fallthru
        _
    $region40: #{se_layer.1} parent=5 // pred_fallthru
      _
  $region6: #{se_layer.1} parent=0 // loop_footer
    %s13 = sadd.s32 1, %s9
  $region7: #{se_layer.1} parent=0 // loop_footer_branch
    %8 = sbr.rel target = $region3
  $region8: #{se_layer.1} parent=0 // loop_exit
    _

</llo_original>
